<compile_context>
chip_gen: v7x
topology: tpu7x:2x2x1
jax: 0.10.0
libtpu: 0.0.40
codegen_flags: <defaults>
</compile_context>

<pallas_src>
import functools
import math

import jax
import jax.numpy as jnp
from jax.experimental import pallas as pl
from jax.experimental.pallas import tpu as pltpu


def _attention_kernel(b_ref, q_ref, xkv_ref, wkv_ref, bkv_ref, out_ref, attw_ref):
    """Grid = (core_split, key_block).  Axis 0 "parallel", axis 1 "arbitrary".

    b_ref    : [1]        f32 SMEM  additive offset (1/sqrt(D) if indicator==0)
    q_ref    : [S, Dp]    bf16      pre-projected, pre-scaled Q (resident)
    xkv_ref  : [tj, D]    bf16      streamed key-row block of x
    wkv_ref  : [D, 2*Dp]  bf16      fused, lane-padded [Wk | Wv]^T
    bkv_ref  : [1, 2*Dp]  f32       fused, lane-padded [bk | bv]
    out_ref  : [1, S, Dp] f32       per-core-split partial output (accumulated)
    attw_ref : [S, tj]    f32       attention-weight column block
    """
    j = pl.program_id(1)
    dp = q_ref.shape[1]

    @pl.when(j == 0)
    def _():
        out_ref[...] = jnp.zeros(out_ref.shape, out_ref.dtype)

    # Fused K|V projection for this key block (one [tj,D]x[D,2Dp] matmul).
    kv = jnp.dot(xkv_ref[...], wkv_ref[...],
                 preferred_element_type=jnp.float32) + bkv_ref[...]
    k_blk = kv[:, :dp].astype(jnp.bfloat16)      # [tj, Dp] lane-aligned slice
    v_blk = kv[:, dp:].astype(jnp.bfloat16)      # [tj, Dp] lane-aligned slice

    # sim[i, jj] = (a*Q[i]) . K[jj]  (contract last dims; no explicit transpose;
    # the indicator scale a is already folded into Q).
    sim = jax.lax.dot_general(
        q_ref[...], k_blk,
        dimension_numbers=(((1,), (1,)), ((), ())),
        preferred_element_type=jnp.float32)       # [S, tj]
    sim_norm = sim + b_ref[0]                     # pure add (b folded offset)

    # softmax over dim=0 (per column) -- exact within each column block.
    col_max = jnp.max(sim_norm, axis=0, keepdims=True)        # [1, tj]
    e = jnp.exp(sim_norm - col_max)
    col_sum = jnp.sum(e, axis=0, keepdims=True)
    attw = e * pl.reciprocal(col_sum, approx=True)
    attw_ref[...] = attw

    # accumulate this split's attention output across its key blocks.
    pv = jnp.dot(attw.astype(jnp.bfloat16), v_blk,
                 preferred_element_type=jnp.float32)           # [S, Dp]
    out_ref[...] += pv[None, :, :]


def prepare_params(params):
    """One-time parameter prep (keep OUT of the per-call hot path).

    Accepts PyTorch nn.Linear conventions (weight [out, in], bias [out]).
    K|V are fused and lane-padded so the V half starts on a 128-lane boundary.
    """
    wq = jnp.asarray(params["wq"], jnp.float32)
    wk = jnp.asarray(params["wk"], jnp.float32)
    wv = jnp.asarray(params["wv"], jnp.float32)
    bq = jnp.asarray(params["bq"], jnp.float32)
    bk = jnp.asarray(params["bk"], jnp.float32)
    bv = jnp.asarray(params["bv"], jnp.float32)
    d = wq.shape[0]
    dp = ((d + 127) // 128) * 128                      # lane-aligned width

    def pad_cols(m):                                   # [d, d] -> [d, dp]
        return jnp.pad(m, ((0, 0), (0, dp - d)))

    def pad_vec(v):                                    # [d] -> [dp]
        return jnp.pad(v, (0, dp - d))

    return {
        "wq_t": wq.T,                                  # [D, D] f32 (XLA-side Q proj)
        "bq": bq.reshape(1, d),                        # [1, D] f32
        "wkv_t": jnp.concatenate([pad_cols(wk.T), pad_cols(wv.T)],
                                 axis=1).astype(jnp.bfloat16),   # [D, 2*Dp]
        "bkv": jnp.concatenate([pad_vec(bk), pad_vec(bv)]).reshape(1, 2 * dp),
    }


@functools.partial(jax.jit, static_argnames=("block_keys",))
def single_head_self_attention(sent_mat, prepared, indicator, *, block_keys=None):
    """sent_mat: [S, D]; prepared: output of prepare_params(); indicator: 0/1."""
    S, D = sent_mat.shape
    Dp = prepared["wkv_t"].shape[1] // 2

    # indicator folded into scalars: sim_norm = (a*Q) @ K^T + b
    inv = 1.0 / math.sqrt(float(D))
    ind = jnp.asarray(indicator)
    a = jnp.where(ind == 0, -inv, inv).astype(jnp.float32)
    b = jnp.where(ind == 0, inv, 0.0).astype(jnp.float32).reshape(1)

    # Q projection hoisted out of the kernel (plain XLA, f32), scale folded in,
    # padded to lane width Dp, cast to bf16 for the MXU.
    x32 = sent_mat.astype(jnp.float32)
    q = (x32 @ prepared["wq_t"] + prepared["bq"]) * a
    if Dp > D:
        q = jnp.pad(q, ((0, 0), (0, Dp - D)))
    q_bf = q.astype(jnp.bfloat16)
    x_bf = sent_mat.astype(jnp.bfloat16)               # streamed key/value rows

    # ---- VMEM budget (per-generation) & key-tile selection ------------------
    try:
        vmem_capacity = int(pltpu.get_tpu_info().vmem_capacity_bytes)
    except Exception:                                  # be conservative: v7x size
        vmem_capacity = 64 << 20
    vmem_limit = int(0.75 * vmem_capacity)             # headroom for compiler scratch

    def step_bytes(tj):
        return int(
            S * Dp * 2                                 # resident q (single-buffered)
            + D * 2 * Dp * 2 + 2 * Dp * 4              # fused weights+bias (single-buf)
            + 2 * tj * D * 2                           # streamed x block (double-buf)
            + 2 * S * Dp * 4                           # partial-output block (f32)
            + 2 * S * tj * 4                           # attw block (double-buf)
            + tj * 2 * Dp * 4 + 2 * tj * Dp * 2        # kv f32 temp + bf16 K/V
            + 4 * S * tj * 4                           # sim/exp/attw temporaries
        )

    if block_keys is None:
        # Largest lane-aligned key tile that divides S and fits the budget
        # (>=256 fills the 256-wide MXU on v6e/v7x; 128 already fills v5e's).
        candidates = [S] + [c for c in (2048, 1024, 512, 256, 128)
                            if c < S and S % c == 0]
        tj = candidates[-1]
        for c in candidates:
            if step_bytes(c) <= vmem_limit // 2:
                tj = c
                break
    else:
        tj = int(block_keys)
    assert S % tj == 0, "block_keys must divide the sequence length"
    assert tj == S or tj % 128 == 0, "partial key blocks must be lane-aligned"

    n_blocks = S // tj
    # Core split: per-split partial outputs let v7x use both TensorCores; on
    # 1-TC chips (v5e/v6e) this only adds one cheap S*Dp f32 reduce.
    ncs = 2 if (n_blocks % 2 == 0 and n_blocks >= 2) else 1
    npc = n_blocks // ncs

    cost = pl.CostEstimate(
        flops=2 * S * D * 2 * Dp + 4 * S * S * Dp,
        transcendentals=S * S,
        bytes_accessed=(S * D * 2 + S * Dp * 2 + D * 2 * Dp * 2
                        + ncs * S * Dp * 4 + S * S * 4),
    )

    # Single-buffer every constant-index resident input (halves its VMEM).
    resident = functools.partial(pl.BlockSpec,
                                 pipeline_mode=pl.Buffered(buffer_count=1))

    out_part, attw = pl.pallas_call(
        _attention_kernel,
        out_shape=(
            jax.ShapeDtypeStruct((ncs, S, Dp), jnp.float32),   # per-split partials
            jax.ShapeDtypeStruct((S, S), jnp.float32),         # attention_weight
        ),
        grid=(ncs, npc),
        in_specs=[
            pl.BlockSpec(memory_space=pltpu.MemorySpace.SMEM),     # b offset
            resident((S, Dp), lambda c, j: (0, 0)),                # Q (pre-scaled)
            pl.BlockSpec((tj, D), lambda c, j: (c * npc + j, 0)),  # x key-row block
            resident((D, 2 * Dp), lambda c, j: (0, 0)),            # [Wk|Wv]^T fused
            resident((1, 2 * Dp), lambda c, j: (0, 0)),            # [bk|bv] fused
        ],
        out_specs=(
            pl.BlockSpec((1, S, Dp), lambda c, j: (c, 0, 0)),      # partial out
            pl.BlockSpec((S, tj), lambda c, j: (0, c * npc + j)),  # attw columns
        ),
        compiler_params=pltpu.CompilerParams(
            dimension_semantics=("parallel", "arbitrary"),
            vmem_limit_bytes=vmem_limit,
        ),
        cost_estimate=cost,
    )(b, q_bf, x_bf, prepared["wkv_t"], prepared["bkv"])

    out = jnp.sum(out_part, axis=0)[:, :D]        # reduce core splits, drop pad
    return out, attw


def _reference(sent_mat, params, indicator):
    """Pure-JAX f32 reference mirroring the PyTorch forward."""
    D = sent_mat.shape[1]
    q = sent_mat @ params["wq"].T + params["bq"]
    k = sent_mat @ params["wk"].T + params["bk"]
    v = sent_mat @ params["wv"].T + params["bv"]
    sim = q @ k.T
    sim = jnp.where(jnp.asarray(indicator) == 0, 1.0 - sim, sim)
    sim_norm = sim / jnp.sqrt(jnp.float32(D))
    attw = jax.nn.softmax(sim_norm, axis=0)
    return attw @ v, attw


def _make_inputs(key, S, D):
    kx, kwq, kbq, kwk, kbk, kwv, kbv = jax.random.split(key, 7)
    scale = 1.0 / math.sqrt(float(D))
    sent_mat = jax.random.normal(kx, (S, D), dtype=jnp.float32)
    params = {
        "wq": jax.random.uniform(kwq, (D, D), jnp.float32, -1, 1) * scale,
        "bq": jax.random.uniform(kbq, (D,), jnp.float32, -1, 1) * scale,
        "wk": jax.random.uniform(kwk, (D, D), jnp.float32, -1, 1) * scale,
        "bk": jax.random.uniform(kbk, (D,), jnp.float32, -1, 1) * scale,
        "wv": jax.random.uniform(kwv, (D, D), jnp.float32, -1, 1) * scale,
        "bv": jax.random.uniform(kbv, (D,), jnp.float32, -1, 1) * scale,
    }
    return sent_mat, params


if __name__ == "__main__":
    key = jax.random.PRNGKey(0)
    ok = True
    # Small module-sized case (D < 128 exercises the lane-padded fused-K|V
    # path) + a case exercising the tiled / core-split accumulation path.
    for (S, D, blk) in ((8, 32, None), (256, 128, 128)):
        key, sub = jax.random.split(key)
        sent_mat, params = _make_inputs(sub, S, D)
        prepared = prepare_params(params)          # one-time weight prep
        for indicator in (1, 0):
            out, attw = single_head_self_attention(
                sent_mat, prepared, indicator, block_keys=blk)
            out, attw = jax.block_until_ready((out, attw))
            ref_out, ref_attw = _reference(sent_mat, params, indicator)
            # bf16 MXU operands + approx reciprocal -> loosened tolerances
            # (accumulation stays f32).
            ok &= bool(jnp.allclose(out, ref_out, atol=2e-2, rtol=2e-2))
            ok &= bool(jnp.allclose(attw, ref_attw, atol=2e-2, rtol=2e-2))

    if ok:
        print("KERNEL_OK")
    else:
        print("KERNEL_MISMATCH")
</pallas_src>

<mosaic_0001>
module attributes {stable_mosaic.version = 11 : i64} {
  func.func @_attention_kernel(%arg0: i32, %arg1: i32, %arg2: memref<1xf32, #tpu.memory_space<smem>>, %arg3: memref<8x128xbf16, #tpu.memory_space<vmem>>, %arg4: memref<8x32xbf16, #tpu.memory_space<vmem>>, %arg5: memref<32x256xbf16, #tpu.memory_space<vmem>>, %arg6: memref<1x256xf32, #tpu.memory_space<vmem>>, %arg7: memref<1x8x128xf32, #tpu.memory_space<vmem>>, %arg8: memref<8x8xf32, #tpu.memory_space<vmem>>) attributes {dimension_semantics = [#tpu.dimension_semantics<parallel>, #tpu.dimension_semantics<arbitrary>], iteration_bounds = array<i64: 1, 1>, scalar_prefetch = 0 : i64, scratch_operands = 0 : i64, tpu.core_type = #tpu.core_type<tc>, window_params = [{transform_indices = @transform_0, window_bounds = array<i64: 1>}, {pipeline_mode = #tpu.pipeline_mode<synchronous>, transform_indices = @transform_1, window_bounds = array<i64: 8, 128>}, {transform_indices = @transform_2, window_bounds = array<i64: 8, 32>}, {pipeline_mode = #tpu.pipeline_mode<synchronous>, transform_indices = @transform_3, window_bounds = array<i64: 32, 256>}, {pipeline_mode = #tpu.pipeline_mode<synchronous>, transform_indices = @transform_4, window_bounds = array<i64: 1, 256>}, {transform_indices = @transform_5, window_bounds = array<i64: 1, 8, 128>}, {transform_indices = @transform_6, window_bounds = array<i64: 8, 8>}]} {
    %c0_i32 = arith.constant 0 : i32
    %0 = arith.cmpi eq, %arg1, %c0_i32 : i32
    %1 = arith.extui %0 : i1 to i32
    %c0_i32_0 = arith.constant 0 : i32
    %2 = arith.cmpi ne, %1, %c0_i32_0 : i32
    scf.if %2 {
      %cst_21 = arith.constant 0.000000e+00 : f32
      %35 = vector.broadcast %cst_21 : f32 to vector<1x8x128xf32>
      %c0_22 = arith.constant 0 : index
      %c0_23 = arith.constant 0 : index
      %c0_24 = arith.constant 0 : index
      %36 = vector.load %arg7[%c0_22, %c0_23, %c0_24] : memref<1x8x128xf32, #tpu.memory_space<vmem>>, vector<1x8x128xf32>
      tpu.vector_store %arg7[%c0_22, %c0_23, %c0_24], %35 {strides = array<i32>} : memref<1x8x128xf32, #tpu.memory_space<vmem>>, vector<1x8x128xf32>,
    } else {
    }
    %c0 = arith.constant 0 : index
    %c0_1 = arith.constant 0 : index
    %3 = vector.load %arg4[%c0, %c0_1] : memref<8x32xbf16, #tpu.memory_space<vmem>>, vector<8x32xbf16>
    %c0_2 = arith.constant 0 : index
    %c0_3 = arith.constant 0 : index
    %4 = vector.load %arg5[%c0_2, %c0_3] : memref<32x256xbf16, #tpu.memory_space<vmem>>, vector<32x256xbf16>
    %cst = arith.constant dense<0.000000e+00> : vector<8x256xf32>
    %5 = tpu.matmul %3, %4, %cst {dimension_numbers = #tpu.dot_dimension_numbers<[1], [0], [0], [1], [0, 0, 1, 1], [], []>} : vector<8x32xbf16>, vector<32x256xbf16>, vector<8x256xf32> -> vector<8x256xf32>
    %c0_4 = arith.constant 0 : index
    %c0_5 = arith.constant 0 : index
    %6 = vector.load %arg6[%c0_4, %c0_5] : memref<1x256xf32, #tpu.memory_space<vmem>>, vector<1x256xf32>
    %7 = vector.broadcast %6 : vector<1x256xf32> to vector<8x256xf32>
    %8 = arith.addf %5, %7 : vector<8x256xf32>
    %9 = vector.extract_strided_slice %8 {offsets = [0, 0], sizes = [8, 128], strides = [1, 1]} : vector<8x256xf32> to vector<8x128xf32>
    %10 = arith.truncf %9 : vector<8x128xf32> to vector<8x128xbf16>
    %11 = vector.extract_strided_slice %8 {offsets = [0, 128], sizes = [8, 128], strides = [1, 1]} : vector<8x256xf32> to vector<8x128xf32>
    %12 = arith.truncf %11 : vector<8x128xf32> to vector<8x128xbf16>
    %c0_6 = arith.constant 0 : index
    %c0_7 = arith.constant 0 : index
    %13 = vector.load %arg3[%c0_6, %c0_7] : memref<8x128xbf16, #tpu.memory_space<vmem>>, vector<8x128xbf16>
    %cst_8 = arith.constant dense<0.000000e+00> : vector<8x8xf32>
    %14 = tpu.matmul %13, %10, %cst_8 {dimension_numbers = #tpu.dot_dimension_numbers<[1], [1], [0], [0], [0, 0, 1, 0], [], []>} : vector<8x128xbf16>, vector<8x128xbf16>, vector<8x8xf32> -> vector<8x8xf32>
    %c0_9 = arith.constant 0 : index
    %15 = memref.load %arg2[%c0_9] : memref<1xf32, #tpu.memory_space<smem>>
    %16 = vector.broadcast %15 : f32 to vector<8x8xf32>
    %17 = arith.addf %14, %16 : vector<8x8xf32>
    %cst_10 = arith.constant dense<0xFF800000> : vector<8xf32>
    %18 = vector.multi_reduction <maximumf>, %17, %cst_10 [0] : vector<8x8xf32> to vector<8xf32>
    %19 = vector.shape_cast %18 : vector<8xf32> to vector<1x8xf32>
    %20 = vector.broadcast %19 : vector<1x8xf32> to vector<8x8xf32>
    %21 = arith.subf %17, %20 : vector<8x8xf32>
    %22 = math.exp %21 : vector<8x8xf32>
    %cst_11 = arith.constant dense<0.000000e+00> : vector<8xf32>
    %23 = vector.multi_reduction <add>, %22, %cst_11 [0] : vector<8x8xf32> to vector<8xf32>
    %24 = vector.shape_cast %23 : vector<8xf32> to vector<1x8xf32>
    %25 = tpu.reciprocal %24 {approx = true} : vector<1x8xf32> -> vector<1x8xf32>
    %26 = vector.broadcast %25 : vector<1x8xf32> to vector<8x8xf32>
    %27 = arith.mulf %22, %26 : vector<8x8xf32>
    %c0_12 = arith.constant 0 : index
    %c0_13 = arith.constant 0 : index
    %28 = vector.load %arg8[%c0_12, %c0_13] : memref<8x8xf32, #tpu.memory_space<vmem>>, vector<8x8xf32>
    tpu.vector_store %arg8[%c0_12, %c0_13], %27 {strides = array<i32>} : memref<8x8xf32, #tpu.memory_space<vmem>>, vector<8x8xf32>,
    %29 = arith.truncf %27 : vector<8x8xf32> to vector<8x8xbf16>
    %cst_14 = arith.constant dense<0.000000e+00> : vector<8x128xf32>
    %30 = tpu.matmul %29, %12, %cst_14 {dimension_numbers = #tpu.dot_dimension_numbers<[1], [0], [0], [1], [0, 0, 1, 1], [], []>} : vector<8x8xbf16>, vector<8x128xbf16>, vector<8x128xf32> -> vector<8x128xf32>
    %c0_15 = arith.constant 0 : index
    %c0_16 = arith.constant 0 : index
    %c0_17 = arith.constant 0 : index
    %31 = vector.load %arg7[%c0_15, %c0_16, %c0_17] : memref<1x8x128xf32, #tpu.memory_space<vmem>>, vector<1x8x128xf32>
    %32 = vector.shape_cast %30 : vector<8x128xf32> to vector<1x8x128xf32>
    %33 = arith.addf %31, %32 : vector<1x8x128xf32>
    %c0_18 = arith.constant 0 : index
    %c0_19 = arith.constant 0 : index
    %c0_20 = arith.constant 0 : index
    %34 = vector.load %arg7[%c0_18, %c0_19, %c0_20] : memref<1x8x128xf32, #tpu.memory_space<vmem>>, vector<1x8x128xf32>
    tpu.vector_store %arg7[%c0_18, %c0_19, %c0_20], %33 {strides = array<i32>} : memref<1x8x128xf32, #tpu.memory_space<vmem>>, vector<1x8x128xf32>,
    return
  }
  func.func @transform_0(%arg0: i32, %arg1: i32) -> i32 {
    %c0_i32 = arith.constant 0 : i32
    %c0_i32_0 = arith.constant 0 : i32
    return %c0_i32 : i32
  }
  func.func @transform_1(%arg0: i32, %arg1: i32) -> (i32, i32) {
    %c0_i32 = arith.constant 0 : i32
    %c0_i32_0 = arith.constant 0 : i32
    %c0_i32_1 = arith.constant 0 : i32
    return %c0_i32, %c0_i32_0 : i32, i32
  }
  func.func @transform_2(%arg0: i32, %arg1: i32) -> (i32, i32) {
    %c1_i32 = arith.constant 1 : i32
    %0 = arith.muli %arg0, %c1_i32 : i32
    %1 = arith.addi %0, %arg1 : i32
    %c0_i32 = arith.constant 0 : i32
    %c0_i32_0 = arith.constant 0 : i32
    return %1, %c0_i32 : i32, i32
  }
  func.func @transform_3(%arg0: i32, %arg1: i32) -> (i32, i32) {
    %c0_i32 = arith.constant 0 : i32
    %c0_i32_0 = arith.constant 0 : i32
    %c0_i32_1 = arith.constant 0 : i32
    return %c0_i32, %c0_i32_0 : i32, i32
  }
  func.func @transform_4(%arg0: i32, %arg1: i32) -> (i32, i32) {
    %c0_i32 = arith.constant 0 : i32
    %c0_i32_0 = arith.constant 0 : i32
    %c0_i32_1 = arith.constant 0 : i32
    return %c0_i32, %c0_i32_0 : i32, i32
  }
  func.func @transform_5(%arg0: i32, %arg1: i32) -> (i32, i32, i32) {
    %c0_i32 = arith.constant 0 : i32
    %c0_i32_0 = arith.constant 0 : i32
    %c0_i32_1 = arith.constant 0 : i32
    return %arg0, %c0_i32, %c0_i32_0 : i32, i32, i32
  }
  func.func @transform_6(%arg0: i32, %arg1: i32) -> (i32, i32) {
    %c1_i32 = arith.constant 1 : i32
    %0 = arith.muli %arg0, %c1_i32 : i32
    %1 = arith.addi %0, %arg1 : i32
    %c0_i32 = arith.constant 0 : i32
    %c0_i32_0 = arith.constant 0 : i32
    return %c0_i32, %1 : i32, i32
  }
}

</mosaic_0001>

<llo_original>
// kernel: single_head_self_attention.1
$region0: #{single_head_self_attention.1}
  #allocation0 [shape = 'u32[]', space=smem, size = 0x4, offset = 0x4, fixed_abs, tag = 'smem constant byte address 0x4 - core index']
  #allocation1 [shape = 'u32[144,128]{1,0:T(1,128)}', space=vmem, size = 0x12000, scoped, tag = 'internal scratch']
  #allocation2 [shape = 'f32[1]{0:T(128)S(6)}', space=smem, size = 0x200, scoped, tag = 'scoped memory for single_head_self_attention.1']
  %s0 = inlined_call_operand.<no memory space> [shape: f32[1], index: 0, kind: input, shape index: {}]
  %s1 = inlined_call_operand.vmem [shape: bf16[8,128], index: 1, kind: input, shape index: {}]
  %s2 = inlined_call_operand.vmem [shape: bf16[8,32], index: 2, kind: input, shape index: {}]
  %s3 = inlined_call_operand.vmem [shape: bf16[32,256], index: 3, kind: input, shape index: {}]
  %s4 = inlined_call_operand.vmem [shape: f32[1,256], index: 4, kind: input, shape index: {}]
  %s5 = inlined_call_operand.hbm [shape: f32[1,8,128], index: 5, kind: output, shape index: {0}]
  %s6 = inlined_call_operand.hbm [shape: f32[8,8], index: 6, kind: output, shape index: {1}]
  %7 = xla_tuple %s5, %s6
  %s8 = sld [smem:[#allocation0]]
  $region42: #{single_head_self_attention.1} parent=0
    _
  %s10 = ssub.s32 1, %s8
  %s11 = scalar_select 0, %s10, %s8
  %12 = sst [smem:[#allocation2]] %s0
  $region1: #{single_head_self_attention.1} parent=0
    #allocation3 [shape = 'u8[4096]{0}', space=vmem, size = 0x1000, scoped, tag = 'output window, operand 0, single buffered']
    #allocation4 [shape = 's32[1]{0}', space=sflag, size = 0x4, scoped, tag = 'scoped memory for single_head_self_attention.1']
    #allocation5 [shape = 'u8[4096]{0}', space=vmem, size = 0x1000, scoped, tag = 'output window, operand 1, single buffered']
    #allocation6 [shape = 's32[1]{0}', space=sflag, size = 0x4, scoped, tag = 'scoped memory for single_head_self_attention.1']
    %13 = vsyncpa [#allocation4], 0
    %14 = vsyncpa [#allocation6], 0
    // Predicated region
    $region2: #{single_head_self_attention.1} parent=1 // pred_check
      _
    $region3: #{single_head_self_attention.1} parent=1 // pred_check_branch
      %16 = sbr.rel (0) target = $region5
    $region4: #{single_head_self_attention.1} parent=1 // pred_region
      _
    $region5: #{single_head_self_attention.1} parent=1 // pred_fallthru
      _
    // Predicated region
    $region6: #{single_head_self_attention.1} parent=1 // pred_check
      _
    $region7: #{single_head_self_attention.1} parent=1 // pred_check_branch
      %18 = sbr.rel (0) target = $region9
    $region8: #{single_head_self_attention.1} parent=1 // pred_region
      _
    $region9: #{single_head_self_attention.1} parent=1 // pred_fallthru
      _
    // Predicated region
    $region10: #{single_head_self_attention.1} parent=1 // pred_check
      _
    $region11: #{single_head_self_attention.1} parent=1 // pred_check_branch
      %20 = sbr.rel (0) target = $region13
    $region12: #{single_head_self_attention.1} parent=1 // pred_region
      %s21 = sadd.s32 0, 0
      %p22 = scmp.lt.s32.totalorder %s21, 0
      %s23 = scalar_select %p22, %s21, 0
      %s24 = smul.addr %s23, 4
      %s25 = scalar_lea.vmem %s2, %s24
      %s26 = sadd.s32 0, 0
    $region13: #{single_head_self_attention.1} parent=1 // pred_fallthru
      _
    // Predicated region
    $region14: #{single_head_self_attention.1} parent=1 // pred_check
      _
    $region15: #{single_head_self_attention.1} parent=1 // pred_check_branch
      %28 = sbr.rel (0) target = $region17
    $region16: #{single_head_self_attention.1} parent=1 // pred_region
      _
    $region17: #{single_head_self_attention.1} parent=1 // pred_fallthru
      _
    // Predicated region
    $region18: #{single_head_self_attention.1} parent=1 // pred_check
      _
    $region19: #{single_head_self_attention.1} parent=1 // pred_check_branch
      %30 = sbr.rel (0) target = $region21
    $region20: #{single_head_self_attention.1} parent=1 // pred_region
      _
    $region21: #{single_head_self_attention.1} parent=1 // pred_fallthru
      _
    %s31 = sadd.s32 0, 0
    %p32 = scmp.lt.s32.totalorder %s31, 0
    %s33 = scalar_select %p32, %s31, 0
    %s34 = smul.addr %s33, 4
    %s35 = scalar_lea.vmem %s2, %s34
    %s36 = sadd.s32 0, 0
    %p37 = scmp.lt.s32.totalorder %s36, 0
    %s38 = scalar_select %p37, %s36, 0
    %s39 = smul.addr %s38, 4
    %s40 = scalar_lea.vmem %s2, %s39
    %s41 = sadd.s32 0, 0
    %s42 = sadd.s32 0, 0
    %p44 = scmp.eq.s32.totalorder 0, 0
    // Predicated region
    $region22: #{single_head_self_attention.1} parent=1 // pred_check
      %p45 = pneg %p44
    $region23: #{single_head_self_attention.1} parent=1 // pred_check_branch
      %47 = sbr.rel (%p45) target = $region25
    $region24: #{single_head_self_attention.1} parent=1 // pred_region
      %48 = vst [vmem:[#allocation3] sm:$0xff] 0.0
    $region25: #{single_head_self_attention.1} parent=1 // pred_fallthru
      _
    %v49 = vld [vmem:[%s40] sm:$0xf]
    %v50 = vld [vmem:[%s3] sm:$0xff]
    %v51 = vld [vmem:[%s3 + $0x8] sm:$0xff]
    %v52 = vld [vmem:[%s3 + $0x10] sm:$0xff]
    %v53 = vld [vmem:[%s3 + $0x18] sm:$0xff]
    %v54 = vld [vmem:[%s4] sm:$0x3]
    %v56 = vlaneseq
    %v57 = vshrl.u32 %v56, 7
    %v58 = vsub.s32 0, %v57
    %v59 = vrot.slane %v54, %v58
    %v60 = vlaneseq
    %v61 = vshrl.u32 %v60, 7
    %v62 = vsub.s32 1, %v61
    %v63 = vrot.slane %v54, %v62
    %v70 = vunpack.c.l.b16 %v50
    %v71 = vunpack.c.h.b16 %v50
    %v72 = vunpack.c.l.b16 %v51
    %v73 = vunpack.c.h.b16 %v51
    %v74 = vunpack.c.l.b16 %v52
    %v75 = vunpack.c.h.b16 %v52
    %v76 = vunpack.c.l.b16 %v53
    %v77 = vunpack.c.h.b16 %v53
    %v78 = vpack.c.b16 %v72, %v70
    %v79 = vpack.c.b16 %v73, %v71
    %v80 = vpack.c.b16 %v76, %v74
    %v81 = vpack.c.b16 %v77, %v75
    %vm86 = vcmask 261120
    %v88 = vsel %vm86, %v49, 0
    %90 = vmatprep.subr.bf16.mxu0 %v79
    %91 = vmatpush1.bf16.msra.mxu0 %v78
    %92 = vmatprep.subr.bf16.mxu0 %v81
    %93 = vmatpush1.bf16.msra.mxu0 %v80
    %94 = vmatprep.subr.bf16.mxu0 0
    %95 = vmatpush1.bf16.msra.mxu0 0
    %96 = vmatprep.subr.bf16.mxu0 0
    %97 = vmatpush1.bf16.msra.mxu0 0
    %98 = vmatprep.subr.bf16.mxu0 0
    %99 = vmatpush1.bf16.msra.mxu0 0
    %100 = vmatprep.subr.bf16.mxu0 0
    %101 = vmatpush1.bf16.msra.mxu0 0
    %102 = vmatprep.subr.bf16.mxu0 0
    %103 = vmatpush1.bf16.msra.mxu0 0
    %104 = vmatprep.subr.bf16.mxu0 0
    %105 = vmatpush1.bf16.msra.mxu0 0
    %106 = vmatprep.subr.bf16.mxu0 0
    %107 = vmatpush1.bf16.msra.mxu0 0
    %108 = vmatprep.subr.bf16.mxu0 0
    %109 = vmatpush1.bf16.msra.mxu0 0
    %110 = vmatprep.subr.bf16.mxu0 0
    %111 = vmatpush1.bf16.msra.mxu0 0
    %112 = vmatprep.subr.bf16.mxu0 0
    %113 = vmatpush1.bf16.msra.mxu0 0
    %114 = vmatprep.subr.bf16.mxu0 0
    %115 = vmatpush1.bf16.msra.mxu0 0
    %116 = vmatprep.subr.bf16.mxu0 0
    %117 = vmatpush1.bf16.msra.mxu0 0
    %118 = vmatprep.subr.bf16.mxu0 0
    %119 = vmatpush1.bf16.msra.mxu0 0
    %120 = vmatprep.subr.bf16.mxu0 0
    %121 = vmatpush1.bf16.msra.mxu0 0
    %122 = vmatprep.mubr.bf16.mxu0 0
    %123 = vmatmul.mubr.bf16.gmra.mrb[0].mxu0 %v88
    %v124 = vpop.f32.mrb[0].mxu0
    %v125 = vadd.f32 %v59, %v124
    %v126 = vpop.f32.mrb[0].mxu0
    %v127 = vadd.f32 %v63, %v126
    %v128 = vpop.f32.mrb[0].mxu0
    %v129 = vpop.f32.mrb[0].mxu0
    %130 = vdwg.mxu0
    %v131 = vpack.c.bf16 %v125, %v125
    %v132 = vpack.c.bf16 %v127, %v127
    %v133 = vld [vmem:[%s1] sm:$0xf]
    %s134 = sld [smem:[#allocation2]]
    %v135 = vstv %s134
    %136 = vmatprep.subr.bf16.mxu0 0
    %137 = vmatpush1.bf16.xpose.msra.mxu0 %v131
    %138 = vmatprep.subr.bf16.mxu0 0
    %139 = vmatpush1.bf16.xpose.msra.mxu0 0
    %140 = vmatprep.subr.bf16.mxu0 0
    %141 = vmatpush1.bf16.xpose.msra.mxu0 0
    %142 = vmatprep.subr.bf16.mxu0 0
    %143 = vmatpush1.bf16.xpose.msra.mxu0 0
    %144 = vmatprep.subr.bf16.mxu0 0
    %145 = vmatpush1.bf16.xpose.msra.mxu0 0
    %146 = vmatprep.subr.bf16.mxu0 0
    %147 = vmatpush1.bf16.xpose.msra.mxu0 0
    %148 = vmatprep.subr.bf16.mxu0 0
    %149 = vmatpush1.bf16.xpose.msra.mxu0 0
    %150 = vmatprep.subr.bf16.mxu0 0
    %151 = vmatpush1.bf16.xpose.msra.mxu0 0
    %152 = vmatprep.subr.bf16.mxu0 0
    %153 = vmatpush1.bf16.xpose.msra.mxu0 0
    %154 = vmatprep.subr.bf16.mxu0 0
    %155 = vmatpush1.bf16.xpose.msra.mxu0 0
    %156 = vmatprep.subr.bf16.mxu0 0
    %157 = vmatpush1.bf16.xpose.msra.mxu0 0
    %158 = vmatprep.subr.bf16.mxu0 0
    %159 = vmatpush1.bf16.xpose.msra.mxu0 0
    %160 = vmatprep.subr.bf16.mxu0 0
    %161 = vmatpush1.bf16.xpose.msra.mxu0 0
    %162 = vmatprep.subr.bf16.mxu0 0
    %163 = vmatpush1.bf16.xpose.msra.mxu0 0
    %164 = vmatprep.subr.bf16.mxu0 0
    %165 = vmatpush1.bf16.xpose.msra.mxu0 0
    %166 = vmatprep.subr.bf16.mxu0 0
    %167 = vmatpush1.bf16.xpose.msra.mxu0 0
    %168 = vmatprep.mubr.bf16.mxu0 0
    %169 = vmatmul.mubr.bf16.gmra.mrb[0].mxu0 %v133
    %v170 = vpop.f32.mrb[0].mxu0
    %v171 = vadd.f32 %v135, %v170
    %v172 = vpop.f32.mrb[0].mxu0
    %v173 = vpop.f32.mrb[0].mxu0
    %v174 = vpop.f32.mrb[0].mxu0
    %175 = vdwg.mxu0
    %vm176 = vcmask 64512
    %v177 = vsel %vm176, %v171, -inf
    %v178 = vrot.slane %v177, 4
    %v179 = vmax.f32 %v177, %v178
    %v180 = vrot.slane %v179, 2
    %v181 = vmax.f32 %v179, %v180
    %v182 = vrot.slane %v181, 1
    %v183 = vmax.f32 %v181, %v182
    %v184 = vsub.f32 %v171, %v183
    %v185 = vmul.f32 %v184, 1.442695
    %v186 = vpow.pop %v185
    %v187 = vsel %vm176, %v186, 0.0
    %v188 = vrot.slane %v187, 4
    %v189 = vadd.f32 %v187, %v188
    %v190 = vrot.slane %v189, 2
    %v191 = vadd.f32 %v189, %v190
    %v192 = vrot.slane %v191, 1
    %v193 = vadd.f32 %v191, %v192
    %v194 = vrcp.pop %v193
    %v195 = vmul.f32 %v186, %v194
    %196 = vst.msk [vmem:[#allocation5] sm:$0xff] %vm176, %v195
    %v197 = vpack.c.bf16 %v195, %v195
    %v199 = vsel %vm176, %v197, 0
    %vm201 = vcmask 1043456
    %v203 = vsel %vm201, %v132, 0
    %205 = vmatprep.subr.bf16.mxu0 0
    %206 = vmatpush1.bf16.msra.mxu0 %v203
    %207 = vmatprep.subr.bf16.mxu0 0
    %208 = vmatpush1.bf16.msra.mxu0 0
    %209 = vmatprep.subr.bf16.mxu0 0
    %210 = vmatpush1.bf16.msra.mxu0 0
    %211 = vmatprep.subr.bf16.mxu0 0
    %212 = vmatpush1.bf16.msra.mxu0 0
    %213 = vmatprep.subr.bf16.mxu0 0
    %214 = vmatpush1.bf16.msra.mxu0 0
    %215 = vmatprep.subr.bf16.mxu0 0
    %216 = vmatpush1.bf16.msra.mxu0 0
    %217 = vmatprep.subr.bf16.mxu0 0
    %218 = vmatpush1.bf16.msra.mxu0 0
    %219 = vmatprep.subr.bf16.mxu0 0
    %220 = vmatpush1.bf16.msra.mxu0 0
    %221 = vmatprep.subr.bf16.mxu0 0
    %222 = vmatpush1.bf16.msra.mxu0 0
    %223 = vmatprep.subr.bf16.mxu0 0
    %224 = vmatpush1.bf16.msra.mxu0 0
    %225 = vmatprep.subr.bf16.mxu0 0
    %226 = vmatpush1.bf16.msra.mxu0 0
    %227 = vmatprep.subr.bf16.mxu0 0
    %228 = vmatpush1.bf16.msra.mxu0 0
    %229 = vmatprep.subr.bf16.mxu0 0
    %230 = vmatpush1.bf16.msra.mxu0 0
    %231 = vmatprep.subr.bf16.mxu0 0
    %232 = vmatpush1.bf16.msra.mxu0 0
    %233 = vmatprep.subr.bf16.mxu0 0
    %234 = vmatpush1.bf16.msra.mxu0 0
    %235 = vmatprep.subr.bf16.mxu0 0
    %236 = vmatpush1.bf16.msra.mxu0 0
    %237 = vmatprep.mubr.bf16.mxu0 0
    %238 = vmatmul.mubr.bf16.gmra.mrb[0].mxu0 %v199
    %v239 = vpop.f32.mrb[0].mxu0
    %v240 = vadd.f32 0.0, %v239
    %v241 = vpop.f32.mrb[0].mxu0
    %v242 = vpop.f32.mrb[0].mxu0
    %v243 = vpop.f32.mrb[0].mxu0
    %244 = vdwg.mxu0
    %v245 = vld [vmem:[#allocation3] sm:$0xff]
    %v246 = vadd.f32 %v245, %v240
    %247 = vst [vmem:[#allocation3] sm:$0xff] %v246
    // Predicated region
    $region26: #{single_head_self_attention.1} parent=1 // pred_check
      _
    $region27: #{single_head_self_attention.1} parent=1 // pred_check_branch
      %249 = sbr.rel (0) target = $region29
    $region28: #{single_head_self_attention.1} parent=1 // pred_region
      %s251 = ssub.s32 128, 128
      %252 = vsyncadd [#allocation4], %s251
      %s254 = sshll.u32 [#allocation3], 4
      %s255 = int_to_ptr.vmem [resolvable:$true] %s254
      %257 = dma.vmem_to_hbm [thread:$0]  %s255, 128, %s5, [#allocation4]
    $region29: #{single_head_self_attention.1} parent=1 // pred_fallthru
      _
    // Predicated region
    $region30: #{single_head_self_attention.1} parent=1 // pred_check
      _
    $region31: #{single_head_self_attention.1} parent=1 // pred_check_branch
      %259 = sbr.rel (0) target = $region33
    $region32: #{single_head_self_attention.1} parent=1 // pred_region
      %s260 = sadd.s32 0, 0
      %s262 = ssub.s32 128, 128
      %263 = vsyncadd [#allocation6], %s262
      %s264 = smul.addr %s260, 128
      %s265 = scalar_lea.hbm %s6, %s264
      %s267 = sshll.u32 [#allocation5], 4
      %s268 = int_to_ptr.vmem [resolvable:$true] %s267
      %270 = dma.vmem_to_hbm [thread:$0]  %s268, 128, %s265, [#allocation6]
    $region33: #{single_head_self_attention.1} parent=1 // pred_fallthru
      _
    // Predicated region
    $region34: #{single_head_self_attention.1} parent=1 // pred_check
      _
    $region35: #{single_head_self_attention.1} parent=1 // pred_check_branch
      %272 = sbr.rel (0) target = $region37
    $region36: #{single_head_self_attention.1} parent=1 // pred_region
      %273 = dma.done [#allocation4], 128
    $region37: #{single_head_self_attention.1} parent=1 // pred_fallthru
      _
    // Predicated region
    $region38: #{single_head_self_attention.1} parent=1 // pred_check
      _
    $region39: #{single_head_self_attention.1} parent=1 // pred_check_branch
      %275 = sbr.rel (0) target = $region41
    $region40: #{single_head_self_attention.1} parent=1 // pred_region
      %276 = dma.done [#allocation6], 128
    $region41: #{single_head_self_attention.1} parent=1 // pred_fallthru
      _
    %277 = vsyncpa [#allocation4], 1
    %278 = vsyncpa [#allocation6], 1

</llo_original>
